<compile_context>
chip_gen: v7x
topology: tpu7x:2x2x1
jax: 0.10.0
libtpu: 0.0.40
codegen_flags: <defaults>
</compile_context>

<pallas_src>
import jax
import jax.numpy as jnp
from jax.experimental import pallas as pl
from jax.experimental.pallas import tpu as pltpu


def big_critic_kernel(s_ref, a_ref, w1s_ref, w1a_ref, b1_ref,
                      w2_ref, b2_ref, w3_ref, b3_ref, o_ref):
    wdt = w1s_ref.dtype
    # Layer 1: split matmul replaces concat([state, action]) @ W1.
    h1 = jnp.dot(s_ref[...].astype(wdt), w1s_ref[...],
                 preferred_element_type=jnp.float32)
    h1 = h1 + jnp.dot(a_ref[...].astype(wdt), w1a_ref[...],
                      preferred_element_type=jnp.float32)
    h1 = jnp.maximum(h1 + b1_ref[...], 0.0)                      # (TB, H) f32

    # Layer 2.
    h2 = jnp.dot(h1.astype(w2_ref.dtype), w2_ref[...],
                 preferred_element_type=jnp.float32)
    h2 = jnp.maximum(h2 + b2_ref[...], 0.0)                      # (TB, H) f32

    # Layer 3 (out_features = 1): lane reduction on VPU/XLU, skip the MXU.
    w3 = w3_ref[...].astype(jnp.float32)                         # (1, H)
    out = jnp.sum(h2 * w3, axis=-1, keepdims=True) + b3_ref[...] # (TB, 1)
    o_ref[...] = out


def big_critic_forward(state, action, params, *, batch_tile=256):
    """state: (B, S) f32, action: (B, A) f32 -> (B, 1) f32."""
    w1s, w1a, b1, w2, b2, w3, b3 = params
    B, S = state.shape
    A = action.shape[1]
    H = w1s.shape[1]
    assert batch_tile % 8 == 0

    # Batch tile: multiple of 8 (f32 sublane), capped at batch_tile.
    TB = min(batch_tile, ((B + 7) // 8) * 8)
    Bp = pl.cdiv(B, TB) * TB
    if Bp != B:  # pad batch so B % TB == 0; padded rows are discarded below.
        pad = Bp - B
        state = jnp.pad(state, ((0, pad), (0, 0)))
        action = jnp.pad(action, ((0, pad), (0, 0)))

    tile = lambda shp: pl.BlockSpec(shp, lambda i: (i, 0))        # batch-tiled
    resident = lambda shp: pl.BlockSpec(shp, lambda i: (0, 0))    # weights/bias

    out = pl.pallas_call(
        big_critic_kernel,
        out_shape=jax.ShapeDtypeStruct((Bp, 1), jnp.float32),
        grid=(Bp // TB,),
        in_specs=[
            tile((TB, S)),        # state tile
            tile((TB, A)),        # action tile
            resident((S, H)),     # W1 (state rows)
            resident((A, H)),     # W1 (action rows)
            resident((1, H)),     # b1
            resident((H, H)),     # W2
            resident((1, H)),     # b2
            resident((1, H)),     # W3 (row layout -> lane reduction)
            resident((1, 1)),     # b3
        ],
        out_specs=tile((TB, 1)),
        compiler_params=pltpu.CompilerParams(
            dimension_semantics=("parallel",)),
    )(state, action, w1s, w1a, b1, w2, b2, w3, b3)
    return out[:B]


def init_big_critic_params(key, state_size, act_size, hidden_size,
                           param_dtype=jnp.bfloat16):
    """Mirrors weight_init: orthogonal weights (PyTorch (out,in) shape), zero
    bias.  Weights are transposed to (in,out), W1 split into state/action
    blocks, W3 kept as a (1, H) row, and matmul weights cast to `param_dtype`."""
    k1, k2, k3 = jax.random.split(key, 3)
    ortho = jax.nn.initializers.orthogonal()
    din = state_size + act_size
    w1 = ortho(k1, (hidden_size, din), jnp.float32).T             # (Din, H)
    w1s = w1[:state_size].astype(param_dtype)                     # (S, H)
    w1a = w1[state_size:].astype(param_dtype)                     # (A, H)
    w2 = ortho(k2, (hidden_size, hidden_size), jnp.float32).T.astype(param_dtype)
    w3 = ortho(k3, (1, hidden_size), jnp.float32).astype(param_dtype)  # (1, H)
    b1 = jnp.zeros((1, hidden_size), jnp.float32)
    b2 = jnp.zeros((1, hidden_size), jnp.float32)
    b3 = jnp.zeros((1, 1), jnp.float32)
    return (w1s, w1a, b1, w2, b2, w3, b3)


def big_critic_ref(state, action, params):
    """Pure-JAX reference mirroring the kernel's dtype policy (bf16 matmul
    operands, f32 accumulation/bias/ReLU)."""
    w1s, w1a, b1, w2, b2, w3, b3 = params
    wdt = w1s.dtype
    h1 = (jnp.dot(state.astype(wdt), w1s, preferred_element_type=jnp.float32)
          + jnp.dot(action.astype(wdt), w1a, preferred_element_type=jnp.float32))
    h1 = jax.nn.relu(h1 + b1)
    h2 = jnp.dot(h1.astype(w2.dtype), w2, preferred_element_type=jnp.float32)
    h2 = jax.nn.relu(h2 + b2)
    return jnp.sum(h2 * w3.astype(jnp.float32), axis=-1, keepdims=True) + b3


if __name__ == "__main__":
    B, S, A, H = 8, 12, 4, 128   # small test shapes (module default H is 1024)

    key = jax.random.PRNGKey(0)
    k_state, k_action, k_params = jax.random.split(key, 3)
    state = jax.random.normal(k_state, (B, S), jnp.float32)
    action = jax.random.normal(k_action, (B, A), jnp.float32)
    params = init_big_critic_params(k_params, S, A, H)

    out = big_critic_forward(state, action, params)
    out = jax.block_until_ready(out)

    ref = big_critic_ref(state, action, params)
    assert out.shape == (B, 1), out.shape
    assert jnp.allclose(out, ref, atol=5e-3, rtol=5e-3), (out, ref)

    print("KERNEL_OK")
</pallas_src>

<mosaic_0001>
module attributes {stable_mosaic.version = 11 : i64} {
  func.func @big_critic_kernel(%arg0: i32, %arg1: memref<8x12xf32, #tpu.memory_space<vmem>>, %arg2: memref<8x4xf32, #tpu.memory_space<vmem>>, %arg3: memref<12x128xbf16, #tpu.memory_space<vmem>>, %arg4: memref<4x128xbf16, #tpu.memory_space<vmem>>, %arg5: memref<1x128xf32, #tpu.memory_space<vmem>>, %arg6: memref<128x128xbf16, #tpu.memory_space<vmem>>, %arg7: memref<1x128xf32, #tpu.memory_space<vmem>>, %arg8: memref<1x128xbf16, #tpu.memory_space<vmem>>, %arg9: memref<1x1xf32, #tpu.memory_space<vmem>>, %arg10: memref<8x1xf32, #tpu.memory_space<vmem>>) attributes {dimension_semantics = [#tpu.dimension_semantics<parallel>], iteration_bounds = array<i64: 1>, scalar_prefetch = 0 : i64, scratch_operands = 0 : i64, tpu.core_type = #tpu.core_type<tc>, window_params = [{transform_indices = @transform_0, window_bounds = array<i64: 8, 12>}, {transform_indices = @transform_1, window_bounds = array<i64: 8, 4>}, {pipeline_mode = #tpu.pipeline_mode<synchronous>, transform_indices = @transform_2, window_bounds = array<i64: 12, 128>}, {pipeline_mode = #tpu.pipeline_mode<synchronous>, transform_indices = @transform_3, window_bounds = array<i64: 4, 128>}, {pipeline_mode = #tpu.pipeline_mode<synchronous>, transform_indices = @transform_4, window_bounds = array<i64: 1, 128>}, {pipeline_mode = #tpu.pipeline_mode<synchronous>, transform_indices = @transform_5, window_bounds = array<i64: 128, 128>}, {pipeline_mode = #tpu.pipeline_mode<synchronous>, transform_indices = @transform_6, window_bounds = array<i64: 1, 128>}, {pipeline_mode = #tpu.pipeline_mode<synchronous>, transform_indices = @transform_7, window_bounds = array<i64: 1, 128>}, {pipeline_mode = #tpu.pipeline_mode<synchronous>, transform_indices = @transform_8, window_bounds = array<i64: 1, 1>}, {transform_indices = @transform_9, window_bounds = array<i64: 8, 1>}]} {
    %c0 = arith.constant 0 : index
    %c0_0 = arith.constant 0 : index
    %0 = vector.load %arg1[%c0, %c0_0] : memref<8x12xf32, #tpu.memory_space<vmem>>, vector<8x12xf32>
    %1 = arith.truncf %0 : vector<8x12xf32> to vector<8x12xbf16>
    %c0_1 = arith.constant 0 : index
    %c0_2 = arith.constant 0 : index
    %2 = vector.load %arg3[%c0_1, %c0_2] : memref<12x128xbf16, #tpu.memory_space<vmem>>, vector<12x128xbf16>
    %cst = arith.constant dense<0.000000e+00> : vector<8x128xf32>
    %3 = tpu.matmul %1, %2, %cst {dimension_numbers = #tpu.dot_dimension_numbers<[1], [0], [0], [1], [0, 0, 1, 1], [], []>} : vector<8x12xbf16>, vector<12x128xbf16>, vector<8x128xf32> -> vector<8x128xf32>
    %c0_3 = arith.constant 0 : index
    %c0_4 = arith.constant 0 : index
    %4 = vector.load %arg2[%c0_3, %c0_4] : memref<8x4xf32, #tpu.memory_space<vmem>>, vector<8x4xf32>
    %5 = arith.truncf %4 : vector<8x4xf32> to vector<8x4xbf16>
    %c0_5 = arith.constant 0 : index
    %c0_6 = arith.constant 0 : index
    %6 = vector.load %arg4[%c0_5, %c0_6] : memref<4x128xbf16, #tpu.memory_space<vmem>>, vector<4x128xbf16>
    %cst_7 = arith.constant dense<0.000000e+00> : vector<8x128xf32>
    %7 = tpu.matmul %5, %6, %cst_7 {dimension_numbers = #tpu.dot_dimension_numbers<[1], [0], [0], [1], [0, 0, 1, 1], [], []>} : vector<8x4xbf16>, vector<4x128xbf16>, vector<8x128xf32> -> vector<8x128xf32>
    %8 = arith.addf %3, %7 : vector<8x128xf32>
    %c0_8 = arith.constant 0 : index
    %c0_9 = arith.constant 0 : index
    %9 = vector.load %arg5[%c0_8, %c0_9] : memref<1x128xf32, #tpu.memory_space<vmem>>, vector<1x128xf32>
    %10 = vector.broadcast %9 : vector<1x128xf32> to vector<8x128xf32>
    %11 = arith.addf %8, %10 : vector<8x128xf32>
    %cst_10 = arith.constant 0.000000e+00 : f32
    %12 = vector.broadcast %cst_10 : f32 to vector<8x128xf32>
    %13 = arith.maximumf %11, %12 : vector<8x128xf32>
    %14 = arith.truncf %13 : vector<8x128xf32> to vector<8x128xbf16>
    %c0_11 = arith.constant 0 : index
    %c0_12 = arith.constant 0 : index
    %15 = vector.load %arg6[%c0_11, %c0_12] : memref<128x128xbf16, #tpu.memory_space<vmem>>, vector<128x128xbf16>
    %cst_13 = arith.constant dense<0.000000e+00> : vector<8x128xf32>
    %16 = tpu.matmul %14, %15, %cst_13 {dimension_numbers = #tpu.dot_dimension_numbers<[1], [0], [0], [1], [0, 0, 1, 1], [], []>} : vector<8x128xbf16>, vector<128x128xbf16>, vector<8x128xf32> -> vector<8x128xf32>
    %c0_14 = arith.constant 0 : index
    %c0_15 = arith.constant 0 : index
    %17 = vector.load %arg7[%c0_14, %c0_15] : memref<1x128xf32, #tpu.memory_space<vmem>>, vector<1x128xf32>
    %18 = vector.broadcast %17 : vector<1x128xf32> to vector<8x128xf32>
    %19 = arith.addf %16, %18 : vector<8x128xf32>
    %cst_16 = arith.constant 0.000000e+00 : f32
    %20 = vector.broadcast %cst_16 : f32 to vector<8x128xf32>
    %21 = arith.maximumf %19, %20 : vector<8x128xf32>
    %c0_17 = arith.constant 0 : index
    %c0_18 = arith.constant 0 : index
    %22 = vector.load %arg8[%c0_17, %c0_18] : memref<1x128xbf16, #tpu.memory_space<vmem>>, vector<1x128xbf16>
    %23 = arith.extf %22 : vector<1x128xbf16> to vector<1x128xf32>
    %24 = vector.broadcast %23 : vector<1x128xf32> to vector<8x128xf32>
    %25 = arith.mulf %21, %24 : vector<8x128xf32>
    %cst_19 = arith.constant dense<0.000000e+00> : vector<8xf32>
    %26 = vector.multi_reduction <add>, %25, %cst_19 [1] : vector<8x128xf32> to vector<8xf32>
    %27 = vector.shape_cast %26 : vector<8xf32> to vector<8x1xf32>
    %c0_20 = arith.constant 0 : index
    %c0_21 = arith.constant 0 : index
    %28 = vector.load %arg9[%c0_20, %c0_21] : memref<1x1xf32, #tpu.memory_space<vmem>>, vector<1x1xf32>
    %29 = vector.broadcast %28 : vector<1x1xf32> to vector<8x1xf32>
    %30 = arith.addf %27, %29 : vector<8x1xf32>
    %c0_22 = arith.constant 0 : index
    %c0_23 = arith.constant 0 : index
    %31 = vector.load %arg10[%c0_22, %c0_23] : memref<8x1xf32, #tpu.memory_space<vmem>>, vector<8x1xf32>
    tpu.vector_store %arg10[%c0_22, %c0_23], %30 {strides = array<i32>} : memref<8x1xf32, #tpu.memory_space<vmem>>, vector<8x1xf32>,
    return
  }
  func.func @transform_0(%arg0: i32) -> (i32, i32) {
    %c0_i32 = arith.constant 0 : i32
    %c0_i32_0 = arith.constant 0 : i32
    return %arg0, %c0_i32 : i32, i32
  }
  func.func @transform_1(%arg0: i32) -> (i32, i32) {
    %c0_i32 = arith.constant 0 : i32
    %c0_i32_0 = arith.constant 0 : i32
    return %arg0, %c0_i32 : i32, i32
  }
  func.func @transform_2(%arg0: i32) -> (i32, i32) {
    %c0_i32 = arith.constant 0 : i32
    %c0_i32_0 = arith.constant 0 : i32
    %c0_i32_1 = arith.constant 0 : i32
    return %c0_i32, %c0_i32_0 : i32, i32
  }
  func.func @transform_3(%arg0: i32) -> (i32, i32) {
    %c0_i32 = arith.constant 0 : i32
    %c0_i32_0 = arith.constant 0 : i32
    %c0_i32_1 = arith.constant 0 : i32
    return %c0_i32, %c0_i32_0 : i32, i32
  }
  func.func @transform_4(%arg0: i32) -> (i32, i32) {
    %c0_i32 = arith.constant 0 : i32
    %c0_i32_0 = arith.constant 0 : i32
    %c0_i32_1 = arith.constant 0 : i32
    return %c0_i32, %c0_i32_0 : i32, i32
  }
  func.func @transform_5(%arg0: i32) -> (i32, i32) {
    %c0_i32 = arith.constant 0 : i32
    %c0_i32_0 = arith.constant 0 : i32
    %c0_i32_1 = arith.constant 0 : i32
    return %c0_i32, %c0_i32_0 : i32, i32
  }
  func.func @transform_6(%arg0: i32) -> (i32, i32) {
    %c0_i32 = arith.constant 0 : i32
    %c0_i32_0 = arith.constant 0 : i32
    %c0_i32_1 = arith.constant 0 : i32
    return %c0_i32, %c0_i32_0 : i32, i32
  }
  func.func @transform_7(%arg0: i32) -> (i32, i32) {
    %c0_i32 = arith.constant 0 : i32
    %c0_i32_0 = arith.constant 0 : i32
    %c0_i32_1 = arith.constant 0 : i32
    return %c0_i32, %c0_i32_0 : i32, i32
  }
  func.func @transform_8(%arg0: i32) -> (i32, i32) {
    %c0_i32 = arith.constant 0 : i32
    %c0_i32_0 = arith.constant 0 : i32
    %c0_i32_1 = arith.constant 0 : i32
    return %c0_i32, %c0_i32_0 : i32, i32
  }
  func.func @transform_9(%arg0: i32) -> (i32, i32) {
    %c0_i32 = arith.constant 0 : i32
    %c0_i32_0 = arith.constant 0 : i32
    return %arg0, %c0_i32 : i32, i32
  }
}

</mosaic_0001>

<llo_original>
// kernel: tpu_custom_call.1
$region0: #{tpu_custom_call.1}
  #allocation0 [shape = 'u32[]', space=smem, size = 0x4, offset = 0x4, fixed_abs, tag = 'smem constant byte address 0x4 - core index']
  #allocation1 [shape = 'u32[144,128]{1,0:T(1,128)}', space=vmem, size = 0x12000, scoped, tag = 'internal scratch']
  #allocation2 [shape = 'f32[1,1]{1,0:T(1,128)S(1)}', space=vmem, size = 0x200, scoped, tag = 'scoped memory for tpu_custom_call.1']
  %s0 = inlined_call_operand.vmem [shape: f32[8,12], index: 0, kind: input, shape index: {}]
  %s1 = inlined_call_operand.vmem [shape: f32[8,4], index: 1, kind: input, shape index: {}]
  %s2 = inlined_call_operand.vmem [shape: bf16[12,128], index: 2, kind: input, shape index: {}]
  %s3 = inlined_call_operand.vmem [shape: bf16[4,128], index: 3, kind: input, shape index: {}]
  %s4 = inlined_call_operand.vmem [shape: f32[1,128], index: 4, kind: input, shape index: {}]
  %s5 = inlined_call_operand.hbm [shape: bf16[128,128], index: 5, kind: input, shape index: {}]
  %s6 = inlined_call_operand.vmem [shape: f32[1,128], index: 6, kind: input, shape index: {}]
  %s7 = inlined_call_operand.vmem [shape: bf16[1,128], index: 7, kind: input, shape index: {}]
  %s8 = inlined_call_operand.<no memory space> [shape: f32[1,1], index: 8, kind: input, shape index: {}]
  %s9 = inlined_call_operand.vmem [shape: f32[8,1], index: 9, kind: output, shape index: {}]
  %s10 = sld [smem:[#allocation0]]
  $region50: #{tpu_custom_call.1} parent=0
    _
  %s12 = ssub.s32 1, %s10
  %s13 = scalar_select 0, %s12, %s10
  %v14 = vstv %s8
  %15 = vst [vmem:[#allocation2] sm:$0x1] %v14
  $region1: #{tpu_custom_call.1} parent=0
    #allocation3 [shape = 'u8[32768]{0}', space=vmem, size = 0x8000, scoped, tag = 'input window, operand 5, single buffered']
    #allocation4 [shape = 's32[1]{0}', space=sflag, size = 0x4, scoped, tag = 'scoped memory for tpu_custom_call.1']
    %16 = vsyncpa [#allocation4], 0
    // Predicated region
    $region2: #{tpu_custom_call.1} parent=1 // pred_check
      _
    $region3: #{tpu_custom_call.1} parent=1 // pred_check_branch
      %18 = sbr.rel (0) target = $region5
    $region4: #{tpu_custom_call.1} parent=1 // pred_region
      _
    $region5: #{tpu_custom_call.1} parent=1 // pred_fallthru
      _
    // Predicated region
    $region6: #{tpu_custom_call.1} parent=1 // pred_check
      _
    $region7: #{tpu_custom_call.1} parent=1 // pred_check_branch
      %20 = sbr.rel (0) target = $region9
    $region8: #{tpu_custom_call.1} parent=1 // pred_region
      _
    $region9: #{tpu_custom_call.1} parent=1 // pred_fallthru
      _
    // Predicated region
    $region10: #{tpu_custom_call.1} parent=1 // pred_check
      _
    $region11: #{tpu_custom_call.1} parent=1 // pred_check_branch
      %22 = sbr.rel (0) target = $region13
    $region12: #{tpu_custom_call.1} parent=1 // pred_region
      _
    $region13: #{tpu_custom_call.1} parent=1 // pred_fallthru
      _
    // Predicated region
    $region14: #{tpu_custom_call.1} parent=1 // pred_check
      _
    $region15: #{tpu_custom_call.1} parent=1 // pred_check_branch
      %24 = sbr.rel (0) target = $region17
    $region16: #{tpu_custom_call.1} parent=1 // pred_region
      _
    $region17: #{tpu_custom_call.1} parent=1 // pred_fallthru
      _
    // Predicated region
    $region18: #{tpu_custom_call.1} parent=1 // pred_check
      _
    $region19: #{tpu_custom_call.1} parent=1 // pred_check_branch
      %26 = sbr.rel (0) target = $region21
    $region20: #{tpu_custom_call.1} parent=1 // pred_region
      _
    $region21: #{tpu_custom_call.1} parent=1 // pred_fallthru
      _
    // Predicated region
    $region22: #{tpu_custom_call.1} parent=1 // pred_check
      _
    $region23: #{tpu_custom_call.1} parent=1 // pred_check_branch
      %28 = sbr.rel (0) target = $region25
    $region24: #{tpu_custom_call.1} parent=1 // pred_region
      %s30 = ssub.s32 1024, 1024
      %31 = vsyncadd [#allocation4], %s30
      %s32 = sshll.u32 [#allocation3], 4
      %s33 = int_to_ptr.vmem [resolvable:$true] %s32
      %38 = dma.hbm_to_vmem [thread:$0]  %s5, 1024, %s33, [#allocation4], 64, 64, 4
    $region25: #{tpu_custom_call.1} parent=1 // pred_fallthru
      _
    // Predicated region
    $region26: #{tpu_custom_call.1} parent=1 // pred_check
      _
    $region27: #{tpu_custom_call.1} parent=1 // pred_check_branch
      %40 = sbr.rel (0) target = $region29
    $region28: #{tpu_custom_call.1} parent=1 // pred_region
      _
    $region29: #{tpu_custom_call.1} parent=1 // pred_fallthru
      _
    // Predicated region
    $region30: #{tpu_custom_call.1} parent=1 // pred_check
      _
    $region31: #{tpu_custom_call.1} parent=1 // pred_check_branch
      %42 = sbr.rel (0) target = $region33
    $region32: #{tpu_custom_call.1} parent=1 // pred_region
      _
    $region33: #{tpu_custom_call.1} parent=1 // pred_fallthru
      _
    // Predicated region
    $region34: #{tpu_custom_call.1} parent=1 // pred_check
      _
    $region35: #{tpu_custom_call.1} parent=1 // pred_check_branch
      %44 = sbr.rel (0) target = $region37
    $region36: #{tpu_custom_call.1} parent=1 // pred_region
      _
    $region37: #{tpu_custom_call.1} parent=1 // pred_fallthru
      _
    // Predicated region
    $region38: #{tpu_custom_call.1} parent=1 // pred_check
      _
    $region39: #{tpu_custom_call.1} parent=1 // pred_check_branch
      %46 = sbr.rel (0) target = $region41
    $region40: #{tpu_custom_call.1} parent=1 // pred_region
      %47 = dma.done [#allocation4], 1024
    $region41: #{tpu_custom_call.1} parent=1 // pred_fallthru
      _
    %v49 = vld [vmem:[%s0] sm:$0xff]
    %v50 = vpack.c.bf16 %v49, %v49
    %v51 = vld [vmem:[%s2] sm:$0xf]
    %v52 = vld [vmem:[%s2 + $0x4] sm:$0x3]
    %v53 = vld [vmem:[%s1] sm:$0xff]
    %v54 = vpack.c.bf16 %v53, %v53
    %v55 = vld [vmem:[%s3] sm:$0x3]
    %vm56 = vcmask 31744
    %v58 = vsel %vm56, %v54, 0
    %vm60 = vcmask 1041408
    %v62 = vsel %vm60, %v55, 0
    %64 = vmatprep.subr.bf16.mxu0 0
    %65 = vmatpush1.bf16.msra.mxu0 %v62
    %66 = vmatprep.subr.bf16.mxu0 0
    %67 = vmatpush1.bf16.msra.mxu0 0
    %68 = vmatprep.subr.bf16.mxu0 0
    %69 = vmatpush1.bf16.msra.mxu0 0
    %70 = vmatprep.subr.bf16.mxu0 0
    %71 = vmatpush1.bf16.msra.mxu0 0
    %72 = vmatprep.subr.bf16.mxu0 0
    %73 = vmatpush1.bf16.msra.mxu0 0
    %74 = vmatprep.subr.bf16.mxu0 0
    %75 = vmatpush1.bf16.msra.mxu0 0
    %76 = vmatprep.subr.bf16.mxu0 0
    %77 = vmatpush1.bf16.msra.mxu0 0
    %78 = vmatprep.subr.bf16.mxu0 0
    %79 = vmatpush1.bf16.msra.mxu0 0
    %80 = vmatprep.subr.bf16.mxu0 0
    %81 = vmatpush1.bf16.msra.mxu0 0
    %82 = vmatprep.subr.bf16.mxu0 0
    %83 = vmatpush1.bf16.msra.mxu0 0
    %84 = vmatprep.subr.bf16.mxu0 0
    %85 = vmatpush1.bf16.msra.mxu0 0
    %86 = vmatprep.subr.bf16.mxu0 0
    %87 = vmatpush1.bf16.msra.mxu0 0
    %88 = vmatprep.subr.bf16.mxu0 0
    %89 = vmatpush1.bf16.msra.mxu0 0
    %90 = vmatprep.subr.bf16.mxu0 0
    %91 = vmatpush1.bf16.msra.mxu0 0
    %92 = vmatprep.subr.bf16.mxu0 0
    %93 = vmatpush1.bf16.msra.mxu0 0
    %94 = vmatprep.subr.bf16.mxu0 0
    %95 = vmatpush1.bf16.msra.mxu0 0
    %96 = vmatprep.mubr.bf16.mxu0 0
    %97 = vmatmul.mubr.bf16.gmra.mrb[0].mxu0 %v58
    %v98 = vpop.f32.mrb[0].mxu0
    %v99 = vadd.f32 0.0, %v98
    %v100 = vpop.f32.mrb[0].mxu0
    %v101 = vpop.f32.mrb[0].mxu0
    %v102 = vpop.f32.mrb[0].mxu0
    %103 = vdwg.mxu0
    %v106 = vunpack.c.l.b16 %v51
    %v107 = vunpack.c.l.b16 %v52
    %v108 = vpack.c.b16 %v107, %v106
    %vm109 = vcmask 97280
    %v111 = vsel %vm109, %v50, 0
    %vm113 = vcmask 1045504
    %v115 = vsel %vm113, %v108, 0
    %117 = vmatprep.subr.bf16.mxu0 0
    %118 = vmatpush1.bf16.msra.mxu0 %v115
    %119 = vmatprep.subr.bf16.mxu0 0
    %120 = vmatpush1.bf16.msra.mxu0 0
    %121 = vmatprep.subr.bf16.mxu0 0
    %122 = vmatpush1.bf16.msra.mxu0 0
    %123 = vmatprep.subr.bf16.mxu0 0
    %124 = vmatpush1.bf16.msra.mxu0 0
    %125 = vmatprep.subr.bf16.mxu0 0
    %126 = vmatpush1.bf16.msra.mxu0 0
    %127 = vmatprep.subr.bf16.mxu0 0
    %128 = vmatpush1.bf16.msra.mxu0 0
    %129 = vmatprep.subr.bf16.mxu0 0
    %130 = vmatpush1.bf16.msra.mxu0 0
    %131 = vmatprep.subr.bf16.mxu0 0
    %132 = vmatpush1.bf16.msra.mxu0 0
    %133 = vmatprep.subr.bf16.mxu0 0
    %134 = vmatpush1.bf16.msra.mxu0 0
    %135 = vmatprep.subr.bf16.mxu0 0
    %136 = vmatpush1.bf16.msra.mxu0 0
    %137 = vmatprep.subr.bf16.mxu0 0
    %138 = vmatpush1.bf16.msra.mxu0 0
    %139 = vmatprep.subr.bf16.mxu0 0
    %140 = vmatpush1.bf16.msra.mxu0 0
    %141 = vmatprep.subr.bf16.mxu0 0
    %142 = vmatpush1.bf16.msra.mxu0 0
    %143 = vmatprep.subr.bf16.mxu0 0
    %144 = vmatpush1.bf16.msra.mxu0 0
    %145 = vmatprep.subr.bf16.mxu0 0
    %146 = vmatpush1.bf16.msra.mxu0 0
    %147 = vmatprep.subr.bf16.mxu0 0
    %148 = vmatpush1.bf16.msra.mxu0 0
    %149 = vmatprep.mubr.bf16.mxu0 0
    %150 = vmatmul.mubr.bf16.gmra.mrb[0].mxu0 %v111
    %v151 = vpop.f32.mrb[0].mxu0
    %v152 = vadd.f32 %v99, %v151
    %v153 = vpop.f32.mrb[0].mxu0
    %v154 = vpop.f32.mrb[0].mxu0
    %v155 = vpop.f32.mrb[0].mxu0
    %156 = vdwg.mxu0
    %v157 = vld [vmem:[%s4] sm:$0x1]
    %v159 = vlaneseq
    %v160 = vshrl.u32 %v159, 7
    %v161 = vsub.s32 0, %v160
    %v162 = vrot.slane %v157, %v161
    %v164 = vadd.f32 %v152, %v162
    %v165 = vmax.f32 %v164, 0.0
    %v166 = vpack.c.bf16 %v165, %v165
    %v167 = vld [vmem:[#allocation3] sm:$0xf]
    %v168 = vld [vmem:[#allocation3 + $0x4] sm:$0xf]
    %v169 = vld [vmem:[#allocation3 + $0x8] sm:$0xf]
    %v170 = vld [vmem:[#allocation3 + $0xc] sm:$0xf]
    %v171 = vld [vmem:[#allocation3 + $0x10] sm:$0xf]
    %v172 = vld [vmem:[#allocation3 + $0x14] sm:$0xf]
    %v173 = vld [vmem:[#allocation3 + $0x18] sm:$0xf]
    %v174 = vld [vmem:[#allocation3 + $0x1c] sm:$0xf]
    %v175 = vld [vmem:[#allocation3 + $0x20] sm:$0xf]
    %v176 = vld [vmem:[#allocation3 + $0x24] sm:$0xf]
    %v177 = vld [vmem:[#allocation3 + $0x28] sm:$0xf]
    %v178 = vld [vmem:[#allocation3 + $0x2c] sm:$0xf]
    %v179 = vld [vmem:[#allocation3 + $0x30] sm:$0xf]
    %v180 = vld [vmem:[#allocation3 + $0x34] sm:$0xf]
    %v181 = vld [vmem:[#allocation3 + $0x38] sm:$0xf]
    %v182 = vld [vmem:[#allocation3 + $0x3c] sm:$0xf]
    %v183 = vld [vmem:[%s6] sm:$0x1]
    %v185 = vlaneseq
    %v186 = vshrl.u32 %v185, 7
    %v187 = vsub.s32 0, %v186
    %v188 = vrot.slane %v183, %v187
    %v206 = vunpack.c.l.b16 %v167
    %v207 = vunpack.c.l.b16 %v168
    %v208 = vunpack.c.l.b16 %v169
    %v209 = vunpack.c.l.b16 %v170
    %v210 = vunpack.c.l.b16 %v171
    %v211 = vunpack.c.l.b16 %v172
    %v212 = vunpack.c.l.b16 %v173
    %v213 = vunpack.c.l.b16 %v174
    %v214 = vunpack.c.l.b16 %v175
    %v215 = vunpack.c.l.b16 %v176
    %v216 = vunpack.c.l.b16 %v177
    %v217 = vunpack.c.l.b16 %v178
    %v218 = vunpack.c.l.b16 %v179
    %v219 = vunpack.c.l.b16 %v180
    %v220 = vunpack.c.l.b16 %v181
    %v221 = vunpack.c.l.b16 %v182
    %v222 = vpack.c.b16 %v207, %v206
    %v223 = vpack.c.b16 %v209, %v208
    %v224 = vpack.c.b16 %v211, %v210
    %v225 = vpack.c.b16 %v213, %v212
    %v226 = vpack.c.b16 %v215, %v214
    %v227 = vpack.c.b16 %v217, %v216
    %v228 = vpack.c.b16 %v219, %v218
    %v229 = vpack.c.b16 %v221, %v220
    %238 = vmatprep.subr.bf16.mxu0 0
    %239 = vmatpush1.bf16.msra.mxu0 %v222
    %240 = vmatprep.subr.bf16.mxu0 0
    %241 = vmatpush1.bf16.msra.mxu0 %v223
    %242 = vmatprep.subr.bf16.mxu0 0
    %243 = vmatpush1.bf16.msra.mxu0 %v224
    %244 = vmatprep.subr.bf16.mxu0 0
    %245 = vmatpush1.bf16.msra.mxu0 %v225
    %246 = vmatprep.subr.bf16.mxu0 0
    %247 = vmatpush1.bf16.msra.mxu0 %v226
    %248 = vmatprep.subr.bf16.mxu0 0
    %249 = vmatpush1.bf16.msra.mxu0 %v227
    %250 = vmatprep.subr.bf16.mxu0 0
    %251 = vmatpush1.bf16.msra.mxu0 %v228
    %252 = vmatprep.subr.bf16.mxu0 0
    %253 = vmatpush1.bf16.msra.mxu0 %v229
    %254 = vmatprep.subr.bf16.mxu0 0
    %255 = vmatpush1.bf16.msra.mxu0 0
    %256 = vmatprep.subr.bf16.mxu0 0
    %257 = vmatpush1.bf16.msra.mxu0 0
    %258 = vmatprep.subr.bf16.mxu0 0
    %259 = vmatpush1.bf16.msra.mxu0 0
    %260 = vmatprep.subr.bf16.mxu0 0
    %261 = vmatpush1.bf16.msra.mxu0 0
    %262 = vmatprep.subr.bf16.mxu0 0
    %263 = vmatpush1.bf16.msra.mxu0 0
    %264 = vmatprep.subr.bf16.mxu0 0
    %265 = vmatpush1.bf16.msra.mxu0 0
    %266 = vmatprep.subr.bf16.mxu0 0
    %267 = vmatpush1.bf16.msra.mxu0 0
    %268 = vmatprep.subr.bf16.mxu0 0
    %269 = vmatpush1.bf16.msra.mxu0 0
    %270 = vmatprep.mubr.bf16.mxu0 0
    %271 = vmatmul.mubr.bf16.gmra.mrb[0].mxu0 %v166
    %v272 = vpop.f32.mrb[0].mxu0
    %v273 = vadd.f32 %v188, %v272
    %v274 = vpop.f32.mrb[0].mxu0
    %v275 = vpop.f32.mrb[0].mxu0
    %v276 = vpop.f32.mrb[0].mxu0
    %277 = vdwg.mxu0
    %v278 = vmax.f32 %v273, 0.0
    %v279 = vld [vmem:[%s7] sm:$0x1]
    %v280 = vunpack.c.l.bf16 %v279
    %v281 = vlaneseq
    %v282 = vshrl.u32 %v281, 7
    %v283 = vsub.s32 0, %v282
    %v284 = vrot.slane %v280, %v283
    %v285 = vmul.f32 %v278, %v284
    %286 = vadd.xlane.f32.xlu0 %v285
    %v287 = vpop.xlane.xlu0 %286
    %v288 = vld [vmem:[#allocation2] sm:$0x1]
    %v290 = vlaneseq
    %v291 = vshrl.u32 %v290, 7
    %v292 = vsub.s32 0, %v291
    %v293 = vrot.slane %v288, %v292
    %v295 = vadd.f32 %v287, %v293
    %vm296 = vcmask 7168
    %297 = vst.msk [vmem:[%s9] sm:$0xff] %vm296, %v295
    // Predicated region
    $region42: #{tpu_custom_call.1} parent=1 // pred_check
      _
    $region43: #{tpu_custom_call.1} parent=1 // pred_check_branch
      %299 = sbr.rel (0) target = $region45
    $region44: #{tpu_custom_call.1} parent=1 // pred_region
      _
    $region45: #{tpu_custom_call.1} parent=1 // pred_fallthru
      _
    // Predicated region
    $region46: #{tpu_custom_call.1} parent=1 // pred_check
      _
    $region47: #{tpu_custom_call.1} parent=1 // pred_check_branch
      %301 = sbr.rel (0) target = $region49
    $region48: #{tpu_custom_call.1} parent=1 // pred_region
      _
    $region49: #{tpu_custom_call.1} parent=1 // pred_fallthru
      _
    %302 = vsyncpa [#allocation4], 1

</llo_original>
